<compile_context>
chip_gen: v7x
topology: tpu7x:2x2x1
jax: 0.10.0
libtpu: 0.0.40
codegen_flags: <defaults>
</compile_context>

<pallas_src>
import jax
import jax.numpy as jnp
from jax.experimental import pallas as pl
from jax.experimental.pallas import tpu as pltpu

_LANE = 128


def _pos_enc_add_kernel(x_ref, pos_ref, o_ref):
    # x_ref: (Bt, TF), pos_ref: (1, TF) -> broadcast add over the leading dim.
    o_ref[...] = x_ref[...] + pos_ref[...]


def _pick_batch_tile(B):
    """Full batch if small; otherwise the largest divisor of B that is <= 8."""
    if B <= 8:
        return B
    for bt in range(8, 0, -1):
        if B % bt == 0:
            return bt
    return 1


def _pick_flat_tile(F_pad, Bt, itemsize, target_block_bytes):
    """Largest multiple of 128 dividing F_pad whose (Bt, TF) block fits budget."""
    n = F_pad // _LANE
    for k in range(n, 0, -1):
        if n % k:
            continue
        tf = k * _LANE
        if tf * Bt * itemsize <= target_block_bytes:
            return tf
    return _LANE  # smallest lane-dense tile; always divides F_pad


def positional_encoding_3d(x, position_encoding, *, target_block_bytes=2 << 20):
    """x: (B, N, D); position_encoding: (1, N, D). Returns x + pos (broadcast over B)."""
    B, N, D = x.shape
    assert position_encoding.shape == (1, N, D)

    # Pin dtypes: the learned parameter follows the activation dtype so the
    # in-kernel add does not promote (store dtype == output ref dtype).
    pos = position_encoding.astype(x.dtype)

    F = N * D
    itemsize = jnp.dtype(x.dtype).itemsize

    # Lane-dense flattening (broadcast is only over batch, so this is exact).
    xf = x.reshape(B, F)
    pf = pos.reshape(1, F)

    # Pad the flat dim to a multiple of 128 so every tile is lane-dense
    # (unmasked vst); padding is sliced off after the call.
    F_pad = ((F + _LANE - 1) // _LANE) * _LANE
    if F_pad != F:
        xf = jnp.pad(xf, ((0, 0), (0, F_pad - F)))
        pf = jnp.pad(pf, ((0, 0), (0, F_pad - F)))

    Bt = _pick_batch_tile(B)
    TF = _pick_flat_tile(F_pad, Bt, itemsize, target_block_bytes)

    n_flat = F_pad // TF
    n_batch = B // Bt

    out_flat = pl.pallas_call(
        _pos_enc_add_kernel,
        out_shape=jax.ShapeDtypeStruct((B, F_pad), x.dtype),
        grid_spec=pltpu.PrefetchScalarGridSpec(
            num_scalar_prefetch=0,
            # flat-tile axis OUTER, batch INNER -> pos block index constant
            # across the inner loop, so its tile is DMA'd once per flat tile.
            grid=(n_flat, n_batch),
            in_specs=[
                pl.BlockSpec((Bt, TF), lambda f, b: (b, f)),   # x stream
                pl.BlockSpec((1, TF), lambda f, b: (0, f)),    # pos (batch-resident)
            ],
            out_specs=pl.BlockSpec((Bt, TF), lambda f, b: (b, f)),
        ),
        compiler_params=pltpu.CompilerParams(
            dimension_semantics=("parallel", "parallel"),
        ),
    )(xf, pf)

    if F_pad != F:
        out_flat = out_flat[:, :F]
    return out_flat.reshape(B, N, D)


if __name__ == "__main__":
    key = jax.random.PRNGKey(0)

    # --- Case 1: small shapes consistent with the module -------------------
    B, N, D = 2, 8, 32
    kx, kp, key = (*jax.random.split(key, 2), key)
    kx, kp = jax.random.split(jax.random.PRNGKey(0))
    x = jax.random.normal(kx, (B, N, D), dtype=jnp.float32)
    position_encoding = jax.random.normal(kp, (1, N, D), dtype=jnp.float32)

    out = positional_encoding_3d(x, position_encoding)
    out = jax.block_until_ready(out)
    ref = x + position_encoding
    assert out.shape == (B, N, D)
    assert jnp.allclose(out, ref, atol=1e-6, rtol=1e-6)

    # --- Case 2: non-multiple-of-128 flat dim + forced multi-tile grid -----
    # (exercises the padding path, batch-inner grid ordering and pos residency)
    B2, N2, D2 = 4, 50, 40  # F = 2000 -> padded to 2048
    kx2, kp2 = jax.random.split(jax.random.PRNGKey(1))
    x2 = jax.random.normal(kx2, (B2, N2, D2), dtype=jnp.float32)
    pos2 = jax.random.normal(kp2, (1, N2, D2), dtype=jnp.float32)

    out2 = positional_encoding_3d(x2, pos2, target_block_bytes=2048)
    out2 = jax.block_until_ready(out2)
    ref2 = x2 + pos2
    assert out2.shape == (B2, N2, D2)
    assert jnp.allclose(out2, ref2, atol=1e-6, rtol=1e-6)

    # --- Case 3: bf16 activations with f32 learned parameter ---------------
    x3 = x2.astype(jnp.bfloat16)
    out3 = jax.block_until_ready(positional_encoding_3d(x3, pos2))
    ref3 = x3 + pos2.astype(jnp.bfloat16)
    assert out3.dtype == jnp.bfloat16
    assert jnp.allclose(out3.astype(jnp.float32), ref3.astype(jnp.float32),
                        atol=1e-2, rtol=1e-2)

    print("KERNEL_OK")
</pallas_src>

<mosaic_0001>
module attributes {stable_mosaic.version = 11 : i64} {
  func.func @_pos_enc_add_kernel(%arg0: i32, %arg1: i32, %arg2: memref<2x256xf32, #tpu.memory_space<vmem>>, %arg3: memref<1x256xf32, #tpu.memory_space<vmem>>, %arg4: memref<2x256xf32, #tpu.memory_space<vmem>>) attributes {dimension_semantics = [#tpu.dimension_semantics<parallel>, #tpu.dimension_semantics<parallel>], iteration_bounds = array<i64: 1, 1>, scalar_prefetch = 0 : i64, scratch_operands = 0 : i64, tpu.core_type = #tpu.core_type<tc>, window_params = [{transform_indices = @transform_0, window_bounds = array<i64: 2, 256>}, {transform_indices = @transform_1, window_bounds = array<i64: 1, 256>}, {transform_indices = @transform_2, window_bounds = array<i64: 2, 256>}]} {
    %c0 = arith.constant 0 : index
    %c0_0 = arith.constant 0 : index
    %0 = vector.load %arg2[%c0, %c0_0] : memref<2x256xf32, #tpu.memory_space<vmem>>, vector<2x256xf32>
    %c0_1 = arith.constant 0 : index
    %c0_2 = arith.constant 0 : index
    %1 = vector.load %arg3[%c0_1, %c0_2] : memref<1x256xf32, #tpu.memory_space<vmem>>, vector<1x256xf32>
    %2 = vector.broadcast %1 : vector<1x256xf32> to vector<2x256xf32>
    %3 = arith.addf %0, %2 : vector<2x256xf32>
    %c0_3 = arith.constant 0 : index
    %c0_4 = arith.constant 0 : index
    %4 = vector.load %arg4[%c0_3, %c0_4] : memref<2x256xf32, #tpu.memory_space<vmem>>, vector<2x256xf32>
    tpu.vector_store %arg4[%c0_3, %c0_4], %3 {strides = array<i32>} : memref<2x256xf32, #tpu.memory_space<vmem>>, vector<2x256xf32>,
    return
  }
  func.func @transform_0(%arg0: i32, %arg1: i32) -> (i32, i32) {
    %c0_i32 = arith.constant 0 : i32
    return %arg1, %arg0 : i32, i32
  }
  func.func @transform_1(%arg0: i32, %arg1: i32) -> (i32, i32) {
    %c0_i32 = arith.constant 0 : i32
    %c0_i32_0 = arith.constant 0 : i32
    return %c0_i32, %arg0 : i32, i32
  }
  func.func @transform_2(%arg0: i32, %arg1: i32) -> (i32, i32) {
    %c0_i32 = arith.constant 0 : i32
    return %arg1, %arg0 : i32, i32
  }
}

</mosaic_0001>

<llo_original>
// kernel: tpu_custom_call.1
$region0: #{tpu_custom_call.1}
  #allocation0 [shape = 'u32[]', space=smem, size = 0x4, offset = 0x4, fixed_abs, tag = 'smem constant byte address 0x4 - core index']
  #allocation1 [shape = 'u32[144,128]{1,0:T(1,128)}', space=vmem, size = 0x12000, scoped, tag = 'internal scratch']
  %s0 = inlined_call_operand.hbm [shape: f32[2,256], index: 0, kind: input, shape index: {}]
  %s1 = inlined_call_operand.vmem [shape: f32[1,256], index: 1, kind: input, shape index: {}]
  %s2 = inlined_call_operand.hbm [shape: f32[2,256], index: 2, kind: output, shape index: {}]
  %s3 = sld [smem:[#allocation0]]
  $region22: #{tpu_custom_call.1} parent=0
    _
  %s5 = ssub.s32 1, %s3
  %s6 = scalar_select 0, %s5, %s3
  $region1: #{tpu_custom_call.1} parent=0
    #allocation2 [shape = 'u8[2048]{0}', space=vmem, size = 0x800, scoped, tag = 'input window, operand 0, single buffered']
    #allocation3 [shape = 's32[1]{0}', space=sflag, size = 0x4, scoped, tag = 'scoped memory for tpu_custom_call.1']
    #allocation4 [shape = 's32[1]{0}', space=sflag, size = 0x4, scoped, tag = 'scoped memory for tpu_custom_call.1']
    #allocation5 [shape = 'u8[2048]{0}', space=vmem, size = 0x800, scoped, tag = 'output window, operand 0, single buffered']
    %7 = vsyncpa [#allocation3], 0
    %8 = vsyncpa [#allocation4], 0
    // Predicated region
    $region2: #{tpu_custom_call.1} parent=1 // pred_check
      _
    $region3: #{tpu_custom_call.1} parent=1 // pred_check_branch
      %10 = sbr.rel (0) target = $region5
    $region4: #{tpu_custom_call.1} parent=1 // pred_region
      %s12 = ssub.s32 64, 64
      %13 = vsyncadd [#allocation3], %s12
      %s15 = sshll.u32 [#allocation2], 4
      %s16 = int_to_ptr.vmem [resolvable:$true] %s15
      %18 = dma.hbm_to_vmem [thread:$0]  %s0, 64, %s16, [#allocation3]
    $region5: #{tpu_custom_call.1} parent=1 // pred_fallthru
      _
    // Predicated region
    $region6: #{tpu_custom_call.1} parent=1 // pred_check
      _
    $region7: #{tpu_custom_call.1} parent=1 // pred_check_branch
      %20 = sbr.rel (0) target = $region9
    $region8: #{tpu_custom_call.1} parent=1 // pred_region
      _
    $region9: #{tpu_custom_call.1} parent=1 // pred_fallthru
      _
    // Predicated region
    $region10: #{tpu_custom_call.1} parent=1 // pred_check
      _
    $region11: #{tpu_custom_call.1} parent=1 // pred_check_branch
      %22 = sbr.rel (0) target = $region13
    $region12: #{tpu_custom_call.1} parent=1 // pred_region
      %23 = dma.done [#allocation3], 64
    $region13: #{tpu_custom_call.1} parent=1 // pred_fallthru
      _
    %v24 = vld [vmem:[#allocation2] sm:$0xf]
    %v25 = vld [vmem:[%s1] sm:$0x3]
    %v27 = vlaneseq
    %v28 = vshrl.u32 %v27, 7
    %v29 = vsub.s32 0, %v28
    %v30 = vrot.slane %v25, %v29
    %v31 = vlaneseq
    %v32 = vshrl.u32 %v31, 7
    %v33 = vsub.s32 1, %v32
    %v34 = vrot.slane %v25, %v33
    %v35 = vcombine.low %v30, %v34
    %v37 = vunpack.c.l.s4 1983009808
    %v38 = vunpack.c.0.s8 %v37
    %v39 = vlaneseq
    %v40 = vshrl.u32 %v39, 7
    %v41 = vsub.s32 %v38, %v40
    %v42 = vrot.slane %v35, %v41
    %v44 = vadd.f32 %v24, %v42
    %45 = vst [vmem:[#allocation5] sm:$0xf] %v44
    // Predicated region
    $region14: #{tpu_custom_call.1} parent=1 // pred_check
      _
    $region15: #{tpu_custom_call.1} parent=1 // pred_check_branch
      %47 = sbr.rel (0) target = $region17
    $region16: #{tpu_custom_call.1} parent=1 // pred_region
      %s49 = ssub.s32 64, 64
      %50 = vsyncadd [#allocation4], %s49
      %s52 = sshll.u32 [#allocation5], 4
      %s53 = int_to_ptr.vmem [resolvable:$true] %s52
      %55 = dma.vmem_to_hbm [thread:$0]  %s53, 64, %s2, [#allocation4]
    $region17: #{tpu_custom_call.1} parent=1 // pred_fallthru
      _
    // Predicated region
    $region18: #{tpu_custom_call.1} parent=1 // pred_check
      _
    $region19: #{tpu_custom_call.1} parent=1 // pred_check_branch
      %57 = sbr.rel (0) target = $region21
    $region20: #{tpu_custom_call.1} parent=1 // pred_region
      %58 = dma.done [#allocation4], 64
    $region21: #{tpu_custom_call.1} parent=1 // pred_fallthru
      _
    %59 = vsyncpa [#allocation3], 1
    %60 = vsyncpa [#allocation4], 1

</llo_original>
